<compile_context>
chip_gen: v7x
topology: tpu7x:2x2x1
jax: 0.10.0
libtpu: 0.0.40
codegen_flags: <defaults>
</compile_context>

<pallas_src>
import jax
import jax.numpy as jnp
from jax import lax
from jax.experimental import pallas as pl
from jax.experimental.pallas import tpu as pltpu


# ----------------------------- tiling helpers ------------------------------- #

def _round_up(x, m):
    return ((x + m - 1) // m) * m


def _pick_tile(dim, quantum, cap):
    """Largest tile <= cap that divides dim and is a multiple of `quantum`;
    falls back to the full dim (always a legal block)."""
    if dim <= cap:
        return dim
    t = (cap // quantum) * quantum
    while t >= quantum:
        if dim % t == 0:
            return t
        t -= quantum
    return dim


def _row_tile(rows, quantum, cap):
    """Row tile that divides `rows`; prefers >= 2 row blocks so the 'parallel'
    grid axis gives both v7x TensorCores work."""
    if rows >= 2 * quantum:
        cap = min(cap, max(quantum, ((rows // 2) // quantum) * quantum))
    return _pick_tile(rows, quantum, cap)


def _tpu_vmem_bytes():
    try:
        return int(pltpu.get_tpu_info().vmem_capacity_bytes)
    except Exception:
        return 64 << 20  # conservative (v7x-class) fallback


def _ce_tiling(rows, vocab, logits_dtype):
    vmem = _tpu_vmem_bytes()
    vmem_limit = int(vmem * 3 // 4)          # explicit limit, leave headroom
    if vmem >= (100 << 20):                  # v5e / v6e (128 MiB physical)
        vocab_cap = 8192
    elif vmem >= (48 << 20):                 # v7x (64 MiB per TC)
        vocab_cap = 4096
    else:                                    # small-VMEM parts
        vocab_cap = 2048
    rows_cap = 256
    # sublane quantum: 8 for 32-bit, 16 for 16-bit, 32 for 8-bit dtypes
    q = max(8, (8 * 4) // jnp.dtype(logits_dtype).itemsize)
    tS = _row_tile(rows, q, rows_cap)
    tV = min(vocab_cap, _round_up(vocab, 128))
    return tS, tV, vmem_limit


# ----------------------------- CE kernel ------------------------------------ #

def _make_ce_kernel(V, tV):
    """Online-logsumexp CE with lane-wise accumulators.

    Grid = (rows // tS, cdiv(V, tV)); vocab axis (k) last = reduction axis.
    logits_ref: (tS, tV)   labels_ref: (tS, 1) int32   loss_ref: (tS, 1) f32
    Scratch m/l/c: (tS, 128) f32 per-lane running max / sum-exp / correct-logit.
    Rows with label < 0 are ignored (CrossEntropyLoss ignore_index-style).
    """
    n_cols = tV // 128
    need_mask = (V % tV) != 0   # only the last vocab block can be partial

    def kernel(logits_ref, labels_ref, loss_ref, m_sc, l_sc, c_sc):
        k = pl.program_id(1)
        nk = pl.num_programs(1)
        tS = logits_ref.shape[0]

        @pl.when(k == 0)
        def _():
            m_sc[...] = jnp.full_like(m_sc, -jnp.inf)
            l_sc[...] = jnp.zeros_like(l_sc)
            c_sc[...] = jnp.zeros_like(c_sc)

        labels = labels_ref[...]                 # (tS, 1) int32
        lab_in_blk = labels - k * tV             # label index relative to this block
        lane_iota = lax.broadcasted_iota(jnp.int32, (tS, 128), 1)   # fixed 0..127

        def load_col(c):
            # lane-aligned static slice of the VMEM block: a free view
            xc = logits_ref[:, c * 128:(c + 1) * 128].astype(jnp.float32)
            if need_mask:
                lim = V - k * tV - c * 128       # scalar; lanes >= lim are OOB
                xc = jnp.where(lane_iota < lim, xc, -jnp.inf)
            return xc

        # pass 1: lane-wise block max (pure VALU across column groups)
        blk_max = load_col(0)
        for c in range(1, n_cols):
            blk_max = jnp.maximum(blk_max, load_col(c))

        m_prev = m_sc[...]
        m_new = jnp.maximum(m_prev, blk_max)
        l_new = l_sc[...] * jnp.exp(m_prev - m_new)
        c_new = c_sc[...]

        # pass 2: lane-wise exp-sum + correct-logit accumulation (VALU/EUP only)
        for c in range(n_cols):
            xc = load_col(c)
            l_new = l_new + jnp.exp(xc - m_new)
            onehot = lane_iota == (lab_in_blk - c * 128)   # never true for label<0 / OOB cols
            c_new = c_new + jnp.where(onehot, xc, 0.0)

        m_sc[...] = m_new
        l_sc[...] = l_new
        c_sc[...] = c_new

        # single cross-lane (XLU) reduce, only once per row block
        @pl.when(k == nk - 1)
        def _():
            valid = (labels >= 0).astype(jnp.float32)              # (tS, 1)
            m_l = m_sc[...]
            m_row = jnp.max(m_l, axis=-1, keepdims=True)           # (tS, 1)
            seen = m_l != -jnp.inf                                  # guard never-touched lanes
            l_row = jnp.sum(jnp.where(seen, l_sc[...] * jnp.exp(m_l - m_row), 0.0),
                            axis=-1, keepdims=True)
            c_row = jnp.sum(c_sc[...], axis=-1, keepdims=True)
            loss_ref[...] = (m_row + jnp.log(l_row) - c_row) * valid

    return kernel


def _ce_pallas(logits2, labels2):
    """logits2: (R, V) any float dtype, labels2: (R, 1) int32.
    Returns per-row CE losses of shape (R, 1); ignored rows are 0."""
    R, V = logits2.shape
    tS, tV, vmem_limit = _ce_tiling(R, V, logits2.dtype)
    grid = (R // tS, pl.cdiv(V, tV))
    return pl.pallas_call(
        _make_ce_kernel(V, tV),
        out_shape=jax.ShapeDtypeStruct((R, 1), jnp.float32),
        grid=grid,
        in_specs=[
            pl.BlockSpec((tS, tV), lambda s, k: (s, k)),
            pl.BlockSpec((tS, 1), lambda s, k: (s, 0)),
        ],
        out_specs=pl.BlockSpec((tS, 1), lambda s, k: (s, 0)),
        scratch_shapes=[pltpu.VMEM((tS, 128), jnp.float32)] * 3,
        compiler_params=pltpu.CompilerParams(
            dimension_semantics=("parallel", "arbitrary"),
            vmem_limit_bytes=vmem_limit),
    )(logits2, labels2)


# ----------------------------- fused det + cyc kernel ----------------------- #

def _make_det_cyc_kernel(alpha, beta):
    def kernel(p_ref, t_ref, enc_ref, hid_ref, dec_ref, allb_ref, out_ref):
        """Single launch:
           l_det = alpha * L1(pred, tgt) + beta * mean(1 - diag GIoU) over masked rows
           l_cyc = MSE(encoded_loc_preds, output_loc_hiddens) + L1(dec_loc_embeds, all_boxes)
        Boxes arrive as (N, 4)."""
        p = p_ref[...].astype(jnp.float32)          # (N, 4)
        t = t_ref[...].astype(jnp.float32)          # (N, 4)
        n = p.shape[0]

        # --- det: L1 term (mean over all elements) ---
        l1 = jnp.sum(jnp.sum(jnp.abs(p - t), axis=1, keepdims=True),
                     axis=0, keepdims=True) / (4.0 * n)          # (1, 1)

        px0, py0, px1, py1 = p[:, 0:1], p[:, 1:2], p[:, 2:3], p[:, 3:4]
        tx0, ty0, tx1, ty1 = t[:, 0:1], t[:, 1:2], t[:, 2:3], t[:, 3:4]

        # giou mask: all coords >= 0 and well-formed (x1>=x0, y1>=y0)
        pos = (px0 >= 0) & (py0 >= 0) & (px1 >= 0) & (py1 >= 0)
        wf = (px1 >= px0) & (py1 >= py0)
        mask = pos & wf                                          # (N, 1)

        area_p = (px1 - px0) * (py1 - py0)
        area_t = (tx1 - tx0) * (ty1 - ty0)

        ix0 = jnp.maximum(px0, tx0)
        iy0 = jnp.maximum(py0, ty0)
        ix1 = jnp.minimum(px1, tx1)
        iy1 = jnp.minimum(py1, ty1)
        inter = jnp.maximum(ix1 - ix0, 0.0) * jnp.maximum(iy1 - iy0, 0.0)
        union = area_p + area_t - inter
        iou = inter / union            # no eps guard, mirrors the torch reference

        ex0 = jnp.minimum(px0, tx0)
        ey0 = jnp.minimum(py0, ty0)
        ex1 = jnp.maximum(px1, tx1)
        ey1 = jnp.maximum(py1, ty1)
        earea = jnp.maximum(ex1 - ex0, 0.0) * jnp.maximum(ey1 - ey0, 0.0)
        giou = iou - (earea - union) / earea                     # (N, 1)

        giou_loss = jnp.where(mask, 1.0 - giou, 0.0)             # (N, 1)
        msum = jnp.sum(mask.astype(jnp.float32), axis=0, keepdims=True)    # (1, 1)
        gsum = jnp.sum(giou_loss, axis=0, keepdims=True)                   # (1, 1)
        gmean = gsum / jnp.maximum(msum, 1.0)
        gterm = jnp.where(msum > 0, gmean, 0.0)

        # --- cyc: MSE + L1 ---
        a = enc_ref[...].astype(jnp.float32)
        b = hid_ref[...].astype(jnp.float32)
        c = dec_ref[...].astype(jnp.float32)
        d = allb_ref[...].astype(jnp.float32)
        sq = (a - b) * (a - b)
        mse = jnp.sum(jnp.sum(sq, axis=1, keepdims=True), axis=0, keepdims=True) / a.size
        ab = jnp.abs(c - d)
        l1c = jnp.sum(jnp.sum(ab, axis=1, keepdims=True), axis=0, keepdims=True) / c.size

        out_ref[...] = alpha * l1 + beta * gterm + mse + l1c
    return kernel


def _det_cyc_pallas(loc_preds, tgt_boxes, encoded_loc_preds, output_loc_hiddens,
                    dec_loc_embeds, all_boxes, alpha, beta):
    args = (loc_preds, tgt_boxes,
            encoded_loc_preds, output_loc_hiddens,
            dec_loc_embeds, all_boxes)
    out = pl.pallas_call(
        _make_det_cyc_kernel(alpha, beta),
        out_shape=jax.ShapeDtypeStruct((1, 1), jnp.float32),
        in_specs=[pl.BlockSpec(memory_space=pltpu.MemorySpace.VMEM)] * len(args),
        out_specs=pl.BlockSpec(memory_space=pltpu.MemorySpace.VMEM),
    )(*args)
    return out[0, 0]


# ----------------------------- wrapper --------------------------------------- #

def next_chat_loss(logits, token_targets, loc_preds, tgt_boxes,
                   output_loc_hiddens, dec_loc_embeds, encoded_loc_preds,
                   all_boxes, alpha=2.0, beta=0.2):
    B, S, V = logits.shape
    # Shift only the tiny label tensor; pad the last position with -1 (ignored).
    shift_labels = jnp.concatenate(
        [token_targets[:, 1:], jnp.full((B, 1), -1, dtype=token_targets.dtype)],
        axis=1).astype(jnp.int32)                                # (B, S)

    logits2 = logits.reshape(B * S, V)       # free row-major reshape (no copy)
    labels2 = shift_labels.reshape(B * S, 1)

    per_row = _ce_pallas(logits2, labels2)                       # (B*S, 1)
    n_valid = jnp.maximum(jnp.sum((labels2 >= 0).astype(jnp.float32)), 1.0)
    l_text = jnp.sum(per_row) / n_valid

    l_det_cyc = _det_cyc_pallas(loc_preds, tgt_boxes, encoded_loc_preds,
                                output_loc_hiddens, dec_loc_embeds, all_boxes,
                                alpha, beta)

    total = l_text + l_det_cyc
    return total, {'total loss': total}


# ----------------------------- reference (pure JAX) -------------------------- #

def _reference(logits, token_targets, loc_preds, tgt_boxes,
               output_loc_hiddens, dec_loc_embeds, encoded_loc_preds,
               all_boxes, alpha=2.0, beta=0.2):
    B, S, V = logits.shape
    sl = logits[:, :-1, :].reshape(-1, V).astype(jnp.float32)
    lb = token_targets[:, 1:].reshape(-1)
    lse = jax.scipy.special.logsumexp(sl, axis=-1)
    l_text = jnp.mean(lse - sl[jnp.arange(sl.shape[0]), lb])

    l1 = jnp.mean(jnp.abs(loc_preds - tgt_boxes))
    mask = jnp.all(loc_preds >= 0, axis=1) & jnp.all(loc_preds[:, 2:] >= loc_preds[:, :2], axis=1)
    area_p = (loc_preds[:, 2] - loc_preds[:, 0]) * (loc_preds[:, 3] - loc_preds[:, 1])
    area_t = (tgt_boxes[:, 2] - tgt_boxes[:, 0]) * (tgt_boxes[:, 3] - tgt_boxes[:, 1])
    ilt = jnp.maximum(loc_preds[:, :2], tgt_boxes[:, :2])
    irb = jnp.minimum(loc_preds[:, 2:], tgt_boxes[:, 2:])
    iwh = jnp.maximum(irb - ilt, 0.0)
    inter = iwh[:, 0] * iwh[:, 1]
    union = area_p + area_t - inter
    iou = inter / union
    elt = jnp.minimum(loc_preds[:, :2], tgt_boxes[:, :2])
    erb = jnp.maximum(loc_preds[:, 2:], tgt_boxes[:, 2:])
    ewh = jnp.maximum(erb - elt, 0.0)
    earea = ewh[:, 0] * ewh[:, 1]
    giou = iou - (earea - union) / earea
    msum = jnp.sum(mask.astype(jnp.float32))
    gmean = jnp.sum(jnp.where(mask, 1.0 - giou, 0.0)) / jnp.maximum(msum, 1.0)
    l_det = alpha * l1 + beta * jnp.where(msum > 0, gmean, 0.0)

    l_cyc = (jnp.mean((encoded_loc_preds - output_loc_hiddens) ** 2)
             + jnp.mean(jnp.abs(dec_loc_embeds - all_boxes)))
    return l_text + l_det + l_cyc


# ----------------------------- main ------------------------------------------ #

if __name__ == "__main__":
    key = jax.random.PRNGKey(0)
    k = jax.random.split(key, 8)

    B, S, V = 2, 8, 128       # vocab on the 128-lane axis
    N, H = 6, 32

    logits = jax.random.normal(k[0], (B, S, V), dtype=jnp.float32)
    token_targets = jax.random.randint(k[1], (B, S), 0, V, dtype=jnp.int32)

    # target boxes: well-formed [x0, y0, x1, y1] in [0, 1)
    xy0 = jax.random.uniform(k[2], (N, 2), minval=0.0, maxval=0.4)
    wh = jax.random.uniform(k[3], (N, 2), minval=0.1, maxval=0.5)
    tgt_boxes = jnp.concatenate([xy0, xy0 + wh], axis=1).astype(jnp.float32)

    # predicted boxes: noisy targets, with some rows violating the giou mask
    loc_preds = tgt_boxes + jax.random.uniform(k[4], (N, 4), minval=-0.15, maxval=0.15)
    loc_preds = loc_preds.at[0, 0].set(-0.5)                               # negative coord
    loc_preds = loc_preds.at[1].set(jnp.array([0.6, 0.2, 0.3, 0.5]))       # x1 < x0
    loc_preds = loc_preds.astype(jnp.float32)

    output_loc_hiddens = jax.random.normal(k[5], (N, H), dtype=jnp.float32)
    encoded_loc_preds = output_loc_hiddens + 0.1 * jax.random.normal(k[6], (N, H), dtype=jnp.float32)

    all_boxes = tgt_boxes                                                   # concatenated all_boxes
    dec_loc_embeds = tgt_boxes + 0.05 * jax.random.normal(k[7], (N, 4), dtype=jnp.float32)

    total, info = next_chat_loss(logits, token_targets, loc_preds, tgt_boxes,
                                 output_loc_hiddens, dec_loc_embeds,
                                 encoded_loc_preds, all_boxes,
                                 alpha=2.0, beta=0.2)
    total = jax.block_until_ready(total)

    ref = _reference(logits, token_targets, loc_preds, tgt_boxes,
                     output_loc_hiddens, dec_loc_embeds,
                     encoded_loc_preds, all_boxes, alpha=2.0, beta=0.2)
    assert jnp.allclose(total, ref, rtol=1e-4, atol=1e-4), (total, ref)

    print("KERNEL_OK")
</pallas_src>

<mosaic_0001>
module attributes {stable_mosaic.version = 11 : i64} {
  func.func @kernel(%arg0: i32, %arg1: i32, %arg2: memref<8x128xf32, #tpu.memory_space<vmem>>, %arg3: memref<8x1xi32, #tpu.memory_space<vmem>>, %arg4: memref<8x1xf32, #tpu.memory_space<vmem>>, %arg5: memref<8x128xf32, #tpu.memory_space<vmem>>, %arg6: memref<8x128xf32, #tpu.memory_space<vmem>>, %arg7: memref<8x128xf32, #tpu.memory_space<vmem>>) attributes {dimension_semantics = [#tpu.dimension_semantics<parallel>, #tpu.dimension_semantics<arbitrary>], iteration_bounds = array<i64: 2, 1>, scalar_prefetch = 0 : i64, scratch_operands = 3 : i64, tpu.core_type = #tpu.core_type<tc>, window_params = [{transform_indices = @transform_0, window_bounds = array<i64: 8, 128>}, {transform_indices = @transform_1, window_bounds = array<i64: 8, 1>}, {transform_indices = @transform_2, window_bounds = array<i64: 8, 1>}]} {
    %c0_i32 = arith.constant 0 : i32
    %0 = arith.cmpi eq, %arg1, %c0_i32 : i32
    %1 = arith.extui %0 : i1 to i32
    %c0_i32_0 = arith.constant 0 : i32
    %2 = arith.cmpi ne, %1, %c0_i32_0 : i32
    scf.if %2 {
      %cst_21 = arith.constant 0xFF800000 : f32
      %33 = vector.broadcast %cst_21 : f32 to vector<8x128xf32>
      %c0_22 = arith.constant 0 : index
      %c0_23 = arith.constant 0 : index
      %34 = vector.load %arg5[%c0_22, %c0_23] : memref<8x128xf32, #tpu.memory_space<vmem>>, vector<8x128xf32>
      tpu.vector_store %arg5[%c0_22, %c0_23], %33 {strides = array<i32>} : memref<8x128xf32, #tpu.memory_space<vmem>>, vector<8x128xf32>,
      %cst_24 = arith.constant 0.000000e+00 : f32
      %35 = vector.broadcast %cst_24 : f32 to vector<8x128xf32>
      %c0_25 = arith.constant 0 : index
      %c0_26 = arith.constant 0 : index
      %36 = vector.load %arg6[%c0_25, %c0_26] : memref<8x128xf32, #tpu.memory_space<vmem>>, vector<8x128xf32>
      tpu.vector_store %arg6[%c0_25, %c0_26], %35 {strides = array<i32>} : memref<8x128xf32, #tpu.memory_space<vmem>>, vector<8x128xf32>,
      %cst_27 = arith.constant 0.000000e+00 : f32
      %37 = vector.broadcast %cst_27 : f32 to vector<8x128xf32>
      %c0_28 = arith.constant 0 : index
      %c0_29 = arith.constant 0 : index
      %38 = vector.load %arg7[%c0_28, %c0_29] : memref<8x128xf32, #tpu.memory_space<vmem>>, vector<8x128xf32>
      tpu.vector_store %arg7[%c0_28, %c0_29], %37 {strides = array<i32>} : memref<8x128xf32, #tpu.memory_space<vmem>>, vector<8x128xf32>,
    } else {
    }
    %c0 = arith.constant 0 : index
    %c0_1 = arith.constant 0 : index
    %3 = vector.load %arg3[%c0, %c0_1] : memref<8x1xi32, #tpu.memory_space<vmem>>, vector<8x1xi32>
    %c128_i32 = arith.constant 128 : i32
    %4 = arith.muli %arg1, %c128_i32 : i32
    %5 = vector.broadcast %4 : i32 to vector<8x1xi32>
    %6 = arith.subi %3, %5 : vector<8x1xi32>
    %7 = tpu.iota {dimensions = array<i32: 1>} : vector<8x128xi32>
    %c0_2 = arith.constant 0 : index
    %c0_3 = arith.constant 0 : index
    %8 = vector.load %arg2[%c0_2, %c0_3] : memref<8x128xf32, #tpu.memory_space<vmem>>, vector<8x128xf32>
    %c0_4 = arith.constant 0 : index
    %c0_5 = arith.constant 0 : index
    %9 = vector.load %arg5[%c0_4, %c0_5] : memref<8x128xf32, #tpu.memory_space<vmem>>, vector<8x128xf32>
    %10 = arith.maximumf %9, %8 : vector<8x128xf32>
    %c0_6 = arith.constant 0 : index
    %c0_7 = arith.constant 0 : index
    %11 = vector.load %arg6[%c0_6, %c0_7] : memref<8x128xf32, #tpu.memory_space<vmem>>, vector<8x128xf32>
    %12 = arith.subf %9, %10 : vector<8x128xf32>
    %13 = math.exp %12 : vector<8x128xf32>
    %14 = arith.mulf %11, %13 : vector<8x128xf32>
    %c0_8 = arith.constant 0 : index
    %c0_9 = arith.constant 0 : index
    %15 = vector.load %arg7[%c0_8, %c0_9] : memref<8x128xf32, #tpu.memory_space<vmem>>, vector<8x128xf32>
    %c0_10 = arith.constant 0 : index
    %c0_11 = arith.constant 0 : index
    %16 = vector.load %arg2[%c0_10, %c0_11] : memref<8x128xf32, #tpu.memory_space<vmem>>, vector<8x128xf32>
    %17 = arith.subf %16, %10 : vector<8x128xf32>
    %18 = math.exp %17 : vector<8x128xf32>
    %19 = arith.addf %14, %18 : vector<8x128xf32>
    %c0_i32_12 = arith.constant 0 : i32
    %20 = vector.broadcast %c0_i32_12 : i32 to vector<8x1xi32>
    %21 = arith.subi %6, %20 : vector<8x1xi32>
    %22 = vector.broadcast %21 : vector<8x1xi32> to vector<8x128xi32>
    %23 = arith.cmpi eq, %7, %22 : vector<8x128xi32>
    %cst = arith.constant 0.000000e+00 : f32
    %24 = vector.broadcast %cst : f32 to vector<8x128xf32>
    %25 = arith.select %23, %16, %24 : vector<8x128xi1>, vector<8x128xf32>
    %26 = arith.addf %15, %25 : vector<8x128xf32>
    %c0_13 = arith.constant 0 : index
    %c0_14 = arith.constant 0 : index
    %27 = vector.load %arg5[%c0_13, %c0_14] : memref<8x128xf32, #tpu.memory_space<vmem>>, vector<8x128xf32>
    tpu.vector_store %arg5[%c0_13, %c0_14], %10 {strides = array<i32>} : memref<8x128xf32, #tpu.memory_space<vmem>>, vector<8x128xf32>,
    %c0_15 = arith.constant 0 : index
    %c0_16 = arith.constant 0 : index
    %28 = vector.load %arg6[%c0_15, %c0_16] : memref<8x128xf32, #tpu.memory_space<vmem>>, vector<8x128xf32>
    tpu.vector_store %arg6[%c0_15, %c0_16], %19 {strides = array<i32>} : memref<8x128xf32, #tpu.memory_space<vmem>>, vector<8x128xf32>,
    %c0_17 = arith.constant 0 : index
    %c0_18 = arith.constant 0 : index
    %29 = vector.load %arg7[%c0_17, %c0_18] : memref<8x128xf32, #tpu.memory_space<vmem>>, vector<8x128xf32>
    tpu.vector_store %arg7[%c0_17, %c0_18], %26 {strides = array<i32>} : memref<8x128xf32, #tpu.memory_space<vmem>>, vector<8x128xf32>,
    %c0_i32_19 = arith.constant 0 : i32
    %30 = arith.cmpi eq, %arg1, %c0_i32_19 : i32
    %31 = arith.extui %30 : i1 to i32
    %c0_i32_20 = arith.constant 0 : i32
    %32 = arith.cmpi ne, %31, %c0_i32_20 : i32
    scf.if %32 {
      %c0_i32_21 = arith.constant 0 : i32
      %33 = vector.broadcast %c0_i32_21 : i32 to vector<8x1xi32>
      %34 = arith.cmpi sge, %3, %33 : vector<8x1xi32>
      %35 = arith.extui %34 : vector<8x1xi1> to vector<8x1xi32>
      %36 = arith.sitofp %35 : vector<8x1xi32> to vector<8x1xf32>
      %c0_22 = arith.constant 0 : index
      %c0_23 = arith.constant 0 : index
      %37 = vector.load %arg5[%c0_22, %c0_23] : memref<8x128xf32, #tpu.memory_space<vmem>>, vector<8x128xf32>
      %cst_24 = arith.constant dense<0xFF800000> : vector<8xf32>
      %38 = vector.multi_reduction <maximumf>, %37, %cst_24 [1] : vector<8x128xf32> to vector<8xf32>
      %39 = vector.shape_cast %38 : vector<8xf32> to vector<8x1xf32>
      %cst_25 = arith.constant 0xFF800000 : f32
      %40 = vector.broadcast %cst_25 : f32 to vector<8x128xf32>
      %41 = arith.cmpf one, %37, %40 : vector<8x128xf32>
      %c0_26 = arith.constant 0 : index
      %c0_27 = arith.constant 0 : index
      %42 = vector.load %arg6[%c0_26, %c0_27] : memref<8x128xf32, #tpu.memory_space<vmem>>, vector<8x128xf32>
      %43 = vector.broadcast %39 : vector<8x1xf32> to vector<8x128xf32>
      %44 = arith.subf %37, %43 : vector<8x128xf32>
      %45 = math.exp %44 : vector<8x128xf32>
      %46 = arith.mulf %42, %45 : vector<8x128xf32>
      %cst_28 = arith.constant 0.000000e+00 : f32
      %47 = vector.broadcast %cst_28 : f32 to vector<8x128xf32>
      %48 = arith.select %41, %46, %47 : vector<8x128xi1>, vector<8x128xf32>
      %cst_29 = arith.constant dense<0.000000e+00> : vector<8xf32>
      %49 = vector.multi_reduction <add>, %48, %cst_29 [1] : vector<8x128xf32> to vector<8xf32>
      %50 = vector.shape_cast %49 : vector<8xf32> to vector<8x1xf32>
      %c0_30 = arith.constant 0 : index
      %c0_31 = arith.constant 0 : index
      %51 = vector.load %arg7[%c0_30, %c0_31] : memref<8x128xf32, #tpu.memory_space<vmem>>, vector<8x128xf32>
      %cst_32 = arith.constant dense<0.000000e+00> : vector<8xf32>
      %52 = vector.multi_reduction <add>, %51, %cst_32 [1] : vector<8x128xf32> to vector<8xf32>
      %53 = vector.shape_cast %52 : vector<8xf32> to vector<8x1xf32>
      %54 = math.log %50 : vector<8x1xf32>
      %55 = arith.addf %39, %54 : vector<8x1xf32>
      %56 = arith.subf %55, %53 : vector<8x1xf32>
      %57 = arith.mulf %56, %36 : vector<8x1xf32>
      %c0_33 = arith.constant 0 : index
      %c0_34 = arith.constant 0 : index
      %58 = vector.load %arg4[%c0_33, %c0_34] : memref<8x1xf32, #tpu.memory_space<vmem>>, vector<8x1xf32>
      tpu.vector_store %arg4[%c0_33, %c0_34], %57 {strides = array<i32>} : memref<8x1xf32, #tpu.memory_space<vmem>>, vector<8x1xf32>,
    } else {
    }
    return
  }
  func.func @transform_0(%arg0: i32, %arg1: i32) -> (i32, i32) {
    %c0_i32 = arith.constant 0 : i32
    return %arg0, %arg1 : i32, i32
  }
  func.func @transform_1(%arg0: i32, %arg1: i32) -> (i32, i32) {
    %c0_i32 = arith.constant 0 : i32
    %c0_i32_0 = arith.constant 0 : i32
    return %arg0, %c0_i32 : i32, i32
  }
  func.func @transform_2(%arg0: i32, %arg1: i32) -> (i32, i32) {
    %c0_i32 = arith.constant 0 : i32
    %c0_i32_0 = arith.constant 0 : i32
    return %arg0, %c0_i32 : i32, i32
  }
}

</mosaic_0001>

<llo_original>
// kernel: tpu_custom_call.1
$region0: #{tpu_custom_call.1}
  #allocation0 [shape = 'u32[]', space=smem, size = 0x4, offset = 0x4, fixed_abs, tag = 'smem constant byte address 0x4 - core index']
  #allocation1 [shape = 'u32[144,128]{1,0:T(1,128)}', space=vmem, size = 0x12000, scoped, tag = 'internal scratch']
  #allocation2 [shape = 'f32[8,128]{1,0:T(8,128)}', space=vmem, size = 0x1000, scoped, tag = 'scratch operand']
  #allocation3 [shape = 'f32[8,128]{1,0:T(8,128)}', space=vmem, size = 0x1000, scoped, tag = 'scratch operand']
  #allocation4 [shape = 'f32[8,128]{1,0:T(8,128)}', space=vmem, size = 0x1000, scoped, tag = 'scratch operand']
  %s0 = inlined_call_operand.vmem [shape: f32[16,128], index: 0, kind: input, shape index: {}]
  %s1 = inlined_call_operand.vmem [shape: s32[16,1], index: 1, kind: input, shape index: {}]
  %s2 = inlined_call_operand.vmem [shape: f32[16,1], index: 2, kind: output, shape index: {}]
  %s3 = sld [smem:[#allocation0]]
  $region49: #{tpu_custom_call.1} parent=0
    _
  %s5 = ssub.s32 1, %s3
  %s6 = scalar_select 0, %s5, %s3
  loop: start=0, step=1, limit=4
  $region2: #{tpu_custom_call.1} parent=0 // loop_pre_header
    _
  $region3: #{tpu_custom_call.1} parent=0 // loop_header
    %s8 = sphi 0, %s12
    %p9 = scmp.ge.s32.totalorder %s8, 4
    %s15 = sphi 0, %s27
    %s16 = sphi 0, %s23
    %s17 = sphi 0, %s15
    %s18 = sphi 0, %s16
    %s19 = sphi 0, %s17
    %s20 = sphi 0, %s18
    %s32 = sphi 0, %s34
    %s35 = sphi 0, %s32
    %s36 = sphi 0, %s35
    %s52 = sphi 0, %s36
    %s58 = sphi 0, %s60
    %s61 = sphi 0, %s58
    %s62 = sphi 0, %s61
    %s78 = sphi 0, %s62
    %s84 = sphi 0, %s86
    %s87 = sphi 0, %s84
    %s88 = sphi 0, %s87
    %s104 = sphi 0, %s88
  $region4: #{tpu_custom_call.1} parent=0 // loop_header_branch
    %11 = sbr.rel (%p9) target = $region8
  $region5: #{tpu_custom_call.1} parent=0 // loop_body
    %s13 = ssub.s32 %s8, 1
    %s14 = ssub.s32 %s8, 2
    %s21 = sadd.s32 1, %s16
    %p22 = scmp.ge.s32.totalorder %s21, 1
    %s23 = scalar_select %p22, 0, %s21
    %s24 = sadd.s32 1, %s15
    %s25 = scalar_select %p22, %s24, %s15
    %p26 = scmp.ge.s32.totalorder %s25, 2
    %s27 = scalar_select %p26, 0, %s25
    %s28 = ssub.s32 %s15, %s27
    %s29 = ssub.s32 %s16, %s23
    %s30 = sor.u32 %s28, %s29
    %p31 = scmp.eq.s32.totalorder %s30, 0
    %s33 = sadd.s32 %s32, 1
    %s34 = scalar_select %p31, %s32, %s33
    %p37 = pneg %p31
    %p38 = scmp.eq.s32.totalorder %s8, 1
    %p39 = por %p37, %p38
    %p40 = scmp.ne.s32.totalorder %s32, %s35
    %p41 = scmp.eq.s32.totalorder %s8, 0
    %p42 = por %p40, %p41
    %p43 = scmp.ne.s32.totalorder %s32, %s35
    %p44 = scmp.eq.s32.totalorder %s13, 1
    %p45 = por %p43, %p44
    %p46 = scmp.ne.s32.totalorder %s35, %s36
    %p47 = scmp.eq.s32.totalorder %s13, 0
    %p48 = por %p46, %p47
    %p49 = scmp.ne.s32.totalorder %s35, %s36
    %p50 = scmp.eq.s32.totalorder %s14, 1
    %p51 = por %p49, %p50
    %p53 = scmp.ne.s32.totalorder %s36, %s52
    %p54 = scmp.eq.s32.totalorder %s14, 0
    %p55 = por %p53, %p54
    %s56 = ssub.s32 %s15, %s27
    %p57 = scmp.eq.s32.totalorder %s56, 0
    %s59 = sadd.s32 %s58, 1
    %s60 = scalar_select %p57, %s58, %s59
    %p63 = pneg %p57
    %p64 = scmp.eq.s32.totalorder %s8, 1
    %p65 = por %p63, %p64
    %p66 = scmp.ne.s32.totalorder %s58, %s61
    %p67 = scmp.eq.s32.totalorder %s8, 0
    %p68 = por %p66, %p67
    %p69 = scmp.ne.s32.totalorder %s58, %s61
    %p70 = scmp.eq.s32.totalorder %s13, 1
    %p71 = por %p69, %p70
    %p72 = scmp.ne.s32.totalorder %s61, %s62
    %p73 = scmp.eq.s32.totalorder %s13, 0
    %p74 = por %p72, %p73
    %p75 = scmp.ne.s32.totalorder %s61, %s62
    %p76 = scmp.eq.s32.totalorder %s14, 1
    %p77 = por %p75, %p76
    %p79 = scmp.ne.s32.totalorder %s62, %s78
    %p80 = scmp.eq.s32.totalorder %s14, 0
    %p81 = por %p79, %p80
    %s82 = ssub.s32 %s15, %s27
    %p83 = scmp.eq.s32.totalorder %s82, 0
    %s85 = sadd.s32 %s84, 1
    %s86 = scalar_select %p83, %s84, %s85
    %p89 = pneg %p83
    %p90 = scmp.eq.s32.totalorder %s8, 1
    %p91 = por %p89, %p90
    %p92 = scmp.ne.s32.totalorder %s84, %s87
    %p93 = scmp.eq.s32.totalorder %s8, 0
    %p94 = por %p92, %p93
    %p95 = scmp.ne.s32.totalorder %s84, %s87
    %p96 = scmp.eq.s32.totalorder %s13, 1
    %p97 = por %p95, %p96
    %p98 = scmp.ne.s32.totalorder %s87, %s88
    %p99 = scmp.eq.s32.totalorder %s13, 0
    %p100 = por %p98, %p99
    %p101 = scmp.ne.s32.totalorder %s87, %s88
    %p102 = scmp.eq.s32.totalorder %s14, 1
    %p103 = por %p101, %p102
    %p105 = scmp.ne.s32.totalorder %s88, %s104
    %p106 = scmp.eq.s32.totalorder %s14, 0
    %p107 = por %p105, %p106
    %p108 = scmp.le.s32.totalorder 1, %s8
    %p109 = scmp.lt.s32.totalorder %s8, 3
    %p110 = pnand %p108, %p109
    %p111 = pneg %p110
    // Predicated region
    $region9: #{tpu_custom_call.1} parent=5 // pred_check
      _
    $region10: #{tpu_custom_call.1} parent=5 // pred_check_branch
      %113 = sbr.rel (%p110) target = $region12
    $region11: #{tpu_custom_call.1} parent=5 // pred_region
      %s114 = ssub.s32 %s8, 1
    $region12: #{tpu_custom_call.1} parent=5 // pred_fallthru
      _
    %p115 = scmp.lt.s32.totalorder %s8, 2
    // Predicated region
    $region13: #{tpu_custom_call.1} parent=5 // pred_check
      %p116 = pneg %p115
    $region14: #{tpu_custom_call.1} parent=5 // pred_check_branch
      %118 = sbr.rel (%p116) target = $region16
    $region15: #{tpu_custom_call.1} parent=5 // pred_region
      // Predicated region
      $region17: #{tpu_custom_call.1} parent=15 // pred_check
        %p119 = pneg %p42
      $region18: #{tpu_custom_call.1} parent=15 // pred_check_branch
        %121 = sbr.rel (%p119) target = $region20
      $region19: #{tpu_custom_call.1} parent=15 // pred_region
        %p122 = scmp.lt.s32.totalorder %s15, 1
        %s123 = scalar_select %p122, %s15, 1
        %p124 = scmp.lt.s32.totalorder %s16, 0
        %s125 = scalar_select %p124, %s16, 0
        %s126 = sadd.s32 %s125, %s123
        %s127 = smul.addr %s126, 8
        %s128 = scalar_lea.vmem %s0, %s127
      $region20: #{tpu_custom_call.1} parent=15 // pred_fallthru
        _
      // Predicated region
      $region21: #{tpu_custom_call.1} parent=15 // pred_check
        %p129 = pneg %p68
      $region22: #{tpu_custom_call.1} parent=15 // pred_check_branch
        %131 = sbr.rel (%p129) target = $region24
      $region23: #{tpu_custom_call.1} parent=15 // pred_region
        %p132 = scmp.lt.s32.totalorder %s15, 1
        %s133 = scalar_select %p132, %s15, 1
        %s134 = smul.addr %s133, 8
        %s135 = scalar_lea.vmem %s1, %s134
      $region24: #{tpu_custom_call.1} parent=15 // pred_fallthru
        _
    $region16: #{tpu_custom_call.1} parent=5 // pred_fallthru
      _
    %p136 = scmp.le.s32.totalorder 1, %s8
    %p137 = scmp.lt.s32.totalorder %s8, 3
    %p138 = pnand %p136, %p137
    %p139 = pneg %p138
    // Predicated region
    $region25: #{tpu_custom_call.1} parent=5 // pred_check
      _
    $region26: #{tpu_custom_call.1} parent=5 // pred_check_branch
      %141 = sbr.rel (%p138) target = $region28
    $region27: #{tpu_custom_call.1} parent=5 // pred_region
      %s142 = ssub.s32 %s8, 1
      %p143 = scmp.lt.s32.totalorder %s17, 1
      %s144 = scalar_select %p143, %s17, 1
      %p145 = scmp.lt.s32.totalorder %s18, 0
      %s146 = scalar_select %p145, %s18, 0
      %s147 = sadd.s32 %s146, %s144
      %s148 = smul.addr %s147, 8
      %s149 = scalar_lea.vmem %s0, %s148
      %p150 = pneg %p48
      %p151 = pneg %p45
      %p152 = scmp.lt.s32.totalorder %s17, 1
      %s153 = scalar_select %p152, %s17, 1
      %s154 = smul.addr %s153, 8
      %s155 = scalar_lea.vmem %s1, %s154
      %p156 = pneg %p74
      %p157 = pneg %p71
      %p158 = pneg %p100
      %p159 = pneg %p97
      %p160 = scmp.lt.s32.totalorder %s17, 1
      %s161 = scalar_select %p160, %s17, 1
      %s162 = smul.addr %s161, 8
      %s163 = scalar_lea.vmem %s2, %s162
      %p164 = scmp.lt.s32.totalorder %s17, 1
      %s165 = scalar_select %p164, %s17, 1
      %p166 = scmp.lt.s32.totalorder %s18, 0
      %s167 = scalar_select %p166, %s18, 0
      %s168 = sadd.s32 %s167, %s165
      %s169 = smul.addr %s168, 8
      %s170 = scalar_lea.vmem %s0, %s169
      %p171 = scmp.lt.s32.totalorder %s17, 1
      %s172 = scalar_select %p171, %s17, 1
      %s173 = smul.addr %s172, 8
      %s174 = scalar_lea.vmem %s1, %s173
      %p175 = scmp.lt.s32.totalorder %s17, 1
      %s176 = scalar_select %p175, %s17, 1
      %s177 = smul.addr %s176, 8
      %s178 = scalar_lea.vmem %s2, %s177
      %p179 = scmp.eq.s32.totalorder %s18, 0
      // Predicated region
      $region29: #{tpu_custom_call.1} parent=27 // pred_check
        %p180 = pneg %p179
      $region30: #{tpu_custom_call.1} parent=27 // pred_check_branch
        %182 = sbr.rel (%p180) target = $region32
      $region31: #{tpu_custom_call.1} parent=27 // pred_region
        %183 = vst [vmem:[#allocation2] sm:$0xff] -inf
        %184 = vst [vmem:[#allocation3] sm:$0xff] 0.0
        %185 = vst [vmem:[#allocation4] sm:$0xff] 0.0
      $region32: #{tpu_custom_call.1} parent=27 // pred_fallthru
        _
      %v186 = vld [vmem:[%s174] sm:$0xff]
      %s187 = smul.u32 %s18, 128
      %v188 = vstv %s187
      %v189 = vsub.s32 %v186, %v188
      %v190 = vlaneseq
      %v191 = vand.u32 %v190, 127
      %v192 = vld [vmem:[%s170] sm:$0xff]
      %v193 = vld [vmem:[#allocation2] sm:$0xff]
      %v194 = vmax.f32 %v193, %v192
      %v195 = vld [vmem:[#allocation3] sm:$0xff]
      %v196 = vsub.f32 %v193, %v194
      %v197 = vmul.f32 %v196, 1.442695
      %v198 = vpow.pop %v197
      %v199 = vmul.f32 %v195, %v198
      %v200 = vld [vmem:[#allocation4] sm:$0xff]
      %v201 = vsub.f32 %v192, %v194
      %v202 = vmul.f32 %v201, 1.442695
      %v203 = vpow.pop %v202
      %v204 = vadd.f32 %v199, %v203
      %205 = vset.pattern.permute.xlu0 0
      %206 = vperm.xlu0 %205, %v189
      %v207 = vpop.permute.xlu0 %206
      %vm208 = vcmp.eq.s32.totalorder %v191, %v207
      %v209 = vsel %vm208, %v192, 0.0
      %v210 = vadd.f32 %v200, %v209
      %211 = vst [vmem:[#allocation2] sm:$0xff] %v194
      %212 = vst [vmem:[#allocation3] sm:$0xff] %v204
      %213 = vst [vmem:[#allocation4] sm:$0xff] %v210
      // Predicated region
      $region33: #{tpu_custom_call.1} parent=27 // pred_check
        %p214 = pneg %p179
      $region34: #{tpu_custom_call.1} parent=27 // pred_check_branch
        %216 = sbr.rel (%p214) target = $region36
      $region35: #{tpu_custom_call.1} parent=27 // pred_region
        %vm217 = vcmp.ge.s32.totalorder %v186, 0
        %v218 = vsel %vm217, 1, 0
        %v219 = vcvt.s32.f32 %v218
        %v220 = vld [vmem:[#allocation2] sm:$0xff]
        %221 = vmax.xlane.f32.xlu0 %v220
        %v222 = vpop.xlane.xlu0 %221
        %vm223 = vcmp.ne.f32.partialorder %v220, -inf
        %v224 = vld [vmem:[#allocation3] sm:$0xff]
        %v225 = vsub.f32 %v220, %v222
        %v226 = vmul.f32 %v225, 1.442695
        %v227 = vpow.pop %v226
        %v228 = vmul.f32 %v224, %v227
        %v229 = vsel %vm223, %v228, 0.0
        %230 = vadd.xlane.f32.xlu0 %v229
        %v231 = vpop.xlane.xlu0 %230
        %v232 = vld [vmem:[#allocation4] sm:$0xff]
        %233 = vadd.xlane.f32.xlu0 %v232
        %v234 = vpop.xlane.xlu0 %233
        %v235 = vlog2.pop %v231
        %v236 = vmul.f32 %v235, 0.6931472
        %v237 = vadd.f32 %v222, %v236
        %v238 = vsub.f32 %v237, %v234
        %v239 = vmul.f32 %v238, %v219
        %vm240 = vcmask 7168
        %241 = vst.msk [vmem:[%s178] sm:$0xff] %vm240, %v239
      $region36: #{tpu_custom_call.1} parent=27 // pred_fallthru
        _
      %p242 = scmp.lt.s32.totalorder %s17, 1
      %s243 = scalar_select %p242, %s17, 1
      %s244 = smul.addr %s243, 8
      %s245 = scalar_lea.vmem %s2, %s244
      // Predicated region
      $region37: #{tpu_custom_call.1} parent=27 // pred_check
        %p246 = pneg %p97
      $region38: #{tpu_custom_call.1} parent=27 // pred_check_branch
        %248 = sbr.rel (%p246) target = $region40
      $region39: #{tpu_custom_call.1} parent=27 // pred_region
        _
      $region40: #{tpu_custom_call.1} parent=27 // pred_fallthru
        _
    $region28: #{tpu_custom_call.1} parent=5 // pred_fallthru
      _
    %p249 = scmp.le.s32.totalorder 2, %s8
    // Predicated region
    $region41: #{tpu_custom_call.1} parent=5 // pred_check
      %p250 = pneg %p249
    $region42: #{tpu_custom_call.1} parent=5 // pred_check_branch
      %252 = sbr.rel (%p250) target = $region44
    $region43: #{tpu_custom_call.1} parent=5 // pred_region
      %s253 = ssub.s32 %s8, 2
      // Predicated region
      $region45: #{tpu_custom_call.1} parent=43 // pred_check
        %p254 = pneg %p103
      $region46: #{tpu_custom_call.1} parent=43 // pred_check_branch
        %256 = sbr.rel (%p254) target = $region48
      $region47: #{tpu_custom_call.1} parent=43 // pred_region
        %p257 = scmp.lt.s32.totalorder %s19, 1
        %s258 = scalar_select %p257, %s19, 1
        %s259 = smul.addr %s258, 8
        %s260 = scalar_lea.vmem %s2, %s259
      $region48: #{tpu_custom_call.1} parent=43 // pred_fallthru
        _
    $region44: #{tpu_custom_call.1} parent=5 // pred_fallthru
      _
  $region6: #{tpu_custom_call.1} parent=0 // loop_footer
    %s12 = sadd.s32 1, %s8
  $region7: #{tpu_custom_call.1} parent=0 // loop_footer_branch
    %7 = sbr.rel target = $region3
  $region8: #{tpu_custom_call.1} parent=0 // loop_exit
    _

</llo_original>
